<compile_context>
chip_gen: v7x
topology: tpu7x:2x2x1
jax: 0.10.0
libtpu: 0.0.40
codegen_flags: <defaults>
</compile_context>

<pallas_src>
import jax
import jax.numpy as jnp
from jax.experimental import pallas as pl
from jax.experimental.pallas import tpu as pltpu


def _round_up(x, m):
    return ((x + m - 1) // m) * m


# Raise the scoped-VMEM default (16/32 MiB) so larger lane-dense tiles fit.
# 48 MiB is safe on v5e/v6e (128 MiB physical) and v7x (64 MiB physical).
_VMEM_LIMIT = 48 << 20


def _iou_grid(gx1, gy1, gx2, gy2, ax1, ay1, ax2, ay2):
    """bbox_overlaps(mode='iou', eps=1e-6): only wh is clamped (like torch).

    Shared by kernel 1 and kernel 3 so the recomputation is the exact same f32
    op sequence (bit-identical results)."""
    area_g = (gx2 - gx1) * (gy2 - gy1)
    area_a = (ax2 - ax1) * (ay2 - ay1)
    w = jnp.maximum(jnp.minimum(gx2, ax2) - jnp.maximum(gx1, ax1), 0.0)
    h = jnp.maximum(jnp.minimum(gy2, ay2) - jnp.maximum(gy1, ay1), 0.0)
    overlap = w * h
    union = jnp.maximum(area_g + area_a - overlap, 1e-6)
    return overlap / union


# --------------------------------------------------------------------------
# Kernel 1: pairwise IoU + squared center distance (bbox_overlaps + dist_calculator)
# --------------------------------------------------------------------------
def _pairwise_geom_kernel(gt_ref, anc_ref, ov_ref, dist_ref):
    gt = gt_ref[0]                                   # (n_max, 4)
    anc = anc_ref[...]                               # (4, TN)
    gx1, gy1, gx2, gy2 = gt[:, 0:1], gt[:, 1:2], gt[:, 2:3], gt[:, 3:4]
    ax1, ay1, ax2, ay2 = anc[0:1, :], anc[1:2, :], anc[2:3, :], anc[3:4, :]

    ov_ref[0] = _iou_grid(gx1, gy1, gx2, gy2, ax1, ay1, ax2, ay2)

    # squared center distance (sqrt dropped: only consumed by smallest-k ranking)
    dx = (gx1 + gx2) * 0.5 - (ax1 + ax2) * 0.5
    dy = (gy1 + gy2) * 0.5 - (ay1 + ay2) * 0.5
    dist_ref[0] = dx * dx + dy * dy


def pairwise_geometry(gt_f, anc_pad, tn):
    bs, n_max, _ = gt_f.shape
    n_pad = anc_pad.shape[1]
    grid = (bs, pl.cdiv(n_pad, tn))
    return pl.pallas_call(
        _pairwise_geom_kernel,
        out_shape=(jax.ShapeDtypeStruct((bs, n_max, n_pad), jnp.float32),
                   jax.ShapeDtypeStruct((bs, n_max, n_pad), jnp.float32)),
        grid=grid,
        in_specs=[
            pl.BlockSpec((1, n_max, 4), lambda b, j: (b, 0, 0)),
            pl.BlockSpec((4, tn), lambda b, j: (0, j)),
        ],
        out_specs=(
            pl.BlockSpec((1, n_max, tn), lambda b, j: (b, 0, j)),
            pl.BlockSpec((1, n_max, tn), lambda b, j: (b, 0, j)),
        ),
        compiler_params=pltpu.CompilerParams(
            dimension_semantics=("parallel", "parallel"),
            vmem_limit_bytes=_VMEM_LIMIT),
    )(gt_f, anc_pad)


# --------------------------------------------------------------------------
# Kernel 3: fused mask_pos construction + select_highest_overlaps.
# Emits only target_gt_idx / fg_mask (bs, 1, N_pad).
# --------------------------------------------------------------------------
def _assign_kernel(incand_ref, gt_ref, anc_ref, thr_ref, mgt_ref, tgt_ref, fg_ref):
    incand = incand_ref[0].astype(jnp.float32)       # (n_max, TN) 0/1
    gt = gt_ref[0]                                   # (n_max, 4)
    anc = anc_ref[...]                               # (4, TN)
    thr = thr_ref[0]                                 # (n_max, 1)
    mgt = mgt_ref[0]                                 # (n_max, 1)

    gx1, gy1, gx2, gy2 = gt[:, 0:1], gt[:, 1:2], gt[:, 2:3], gt[:, 3:4]
    ax1, ay1, ax2, ay2 = anc[0:1, :], anc[1:2, :], anc[2:3, :], anc[3:4, :]

    # Recompute IoU with the identical op sequence as kernel 1 (bit-identical),
    # avoiding a second HBM read of the (bs, n_max, N) overlaps map.
    ov = _iou_grid(gx1, gy1, gx2, gy2, ax1, ay1, ax2, ay2)

    # select_candidates_in_gts (eps = 1e-9), recomputed in-register.
    acx = (ax1 + ax2) * 0.5
    acy = (ay1 + ay2) * 0.5
    d = jnp.minimum(jnp.minimum(acx - gx1, acy - gy1),
                    jnp.minimum(gx2 - acx, gy2 - acy))
    in_gts = jnp.where(d > 1e-9, 1.0, 0.0)

    iou_cand = jnp.where(incand > 0, ov, 0.0)
    is_pos = jnp.where(iou_cand > thr, incand, 0.0)
    mask_pos = is_pos * in_gts * mgt                 # (n_max, TN)

    n_max = mask_pos.shape[0]
    m_iota = jax.lax.broadcasted_iota(jnp.int32, mask_pos.shape, 0)

    fg = jnp.sum(mask_pos, axis=0, keepdims=True)    # (1, TN)
    # Resolve anchors matched to multiple gts: keep the highest-IoU gt.
    # (torch gates this on fg.max() > 1; unconditional application is equivalent)
    ov_max = jnp.max(ov, axis=0, keepdims=True)
    max_idx = jnp.min(jnp.where(ov == ov_max, m_iota, n_max),
                      axis=0, keepdims=True)          # first-max (torch argmax)
    is_max = (m_iota == max_idx).astype(jnp.float32)
    mask_pos = jnp.where(fg > 1, is_max, mask_pos)
    fg = jnp.sum(mask_pos, axis=0, keepdims=True)

    mp_max = jnp.max(mask_pos, axis=0, keepdims=True)
    tgt = jnp.min(jnp.where(mask_pos == mp_max, m_iota, n_max),
                  axis=0, keepdims=True)              # argmax over gt axis
    tgt_ref[0] = tgt
    fg_ref[0] = fg


def assign_and_resolve(is_in_candidate_i8, gt_f, anc_pad, thr, mask_gt_f, tn):
    bs, n_max, n_pad = is_in_candidate_i8.shape
    grid = (bs, pl.cdiv(n_pad, tn))
    return pl.pallas_call(
        _assign_kernel,
        out_shape=(jax.ShapeDtypeStruct((bs, 1, n_pad), jnp.int32),
                   jax.ShapeDtypeStruct((bs, 1, n_pad), jnp.float32)),
        grid=grid,
        in_specs=[
            pl.BlockSpec((1, n_max, tn), lambda b, j: (b, 0, j)),
            pl.BlockSpec((1, n_max, 4), lambda b, j: (b, 0, 0)),
            pl.BlockSpec((4, tn), lambda b, j: (0, j)),
            pl.BlockSpec((1, n_max, 1), lambda b, j: (b, 0, 0)),
            pl.BlockSpec((1, n_max, 1), lambda b, j: (b, 0, 0)),
        ],
        out_specs=(
            pl.BlockSpec((1, 1, tn), lambda b, j: (b, 0, j)),
            pl.BlockSpec((1, 1, tn), lambda b, j: (b, 0, j)),
        ),
        compiler_params=pltpu.CompilerParams(
            dimension_semantics=("parallel", "parallel"),
            vmem_limit_bytes=_VMEM_LIMIT),
    )(is_in_candidate_i8, gt_f, anc_pad, thr, mask_gt_f)


# --------------------------------------------------------------------------
# Kernel 2: per-anchor gather IoU (iou_calculator, eps=1e-9).
# (iou * mask_pos).max(gt) == IoU(gt[target_gt_idx], pd) * (fg_mask > 0)
# because mask_pos is at most one-hot over the gt axis per anchor.
# --------------------------------------------------------------------------
def _pred_iou_kernel(gt_ref, pd_ref, tgt_ref, fg_ref, out_ref):
    gt = gt_ref[0]                                   # (n_max, 4)
    pd = pd_ref[0]                                   # (4, TN)
    tgt = tgt_ref[0]                                 # (1, TN) int32
    fg = fg_ref[0]                                   # (1, TN) f32
    n_max, tn = gt.shape[0], pd.shape[1]

    m_iota = jax.lax.broadcasted_iota(jnp.int32, (n_max, tn), 0)
    onehot = (m_iota == tgt).astype(jnp.float32)     # (n_max, TN)
    # gather the assigned gt box per anchor via a masked sublane-sum
    px1 = jnp.sum(gt[:, 0:1] * onehot, axis=0, keepdims=True)
    py1 = jnp.sum(gt[:, 1:2] * onehot, axis=0, keepdims=True)
    px2 = jnp.sum(gt[:, 2:3] * onehot, axis=0, keepdims=True)
    py2 = jnp.sum(gt[:, 3:4] * onehot, axis=0, keepdims=True)
    qx1, qy1, qx2, qy2 = pd[0:1, :], pd[1:2, :], pd[2:3, :], pd[3:4, :]

    # iou_calculator (eps = 1e-9): wh AND areas are clipped at 0
    overlap = (jnp.maximum(jnp.minimum(px2, qx2) - jnp.maximum(px1, qx1), 0.0) *
               jnp.maximum(jnp.minimum(py2, qy2) - jnp.maximum(py1, qy1), 0.0))
    area1 = jnp.maximum(px2 - px1, 0.0) * jnp.maximum(py2 - py1, 0.0)
    area2 = jnp.maximum(qx2 - qx1, 0.0) * jnp.maximum(qy2 - qy1, 0.0)
    union = area1 + area2 - overlap + 1e-9
    out_ref[0] = (overlap / union) * jnp.where(fg > 0, 1.0, 0.0)


def gather_pred_iou(gt_f, pd_bboxes, tgt_pad, fg_pad, tn):
    bs, n_max, _ = gt_f.shape
    n = pd_bboxes.shape[1]
    n_pad = tgt_pad.shape[-1]
    pd_pad = jnp.pad(pd_bboxes.astype(jnp.float32),
                     ((0, 0), (0, n_pad - n), (0, 0)))
    pd_t = jnp.transpose(pd_pad, (0, 2, 1))          # (bs, 4, N_pad)
    out = pl.pallas_call(
        _pred_iou_kernel,
        out_shape=jax.ShapeDtypeStruct((bs, 1, n_pad), jnp.float32),
        grid=(bs, pl.cdiv(n_pad, tn)),
        in_specs=[
            pl.BlockSpec((1, n_max, 4), lambda b, j: (b, 0, 0)),
            pl.BlockSpec((1, 4, tn), lambda b, j: (b, 0, j)),
            pl.BlockSpec((1, 1, tn), lambda b, j: (b, 0, j)),
            pl.BlockSpec((1, 1, tn), lambda b, j: (b, 0, j)),
        ],
        out_specs=pl.BlockSpec((1, 1, tn), lambda b, j: (b, 0, j)),
        compiler_params=pltpu.CompilerParams(
            dimension_semantics=("parallel", "parallel"),
            vmem_limit_bytes=_VMEM_LIMIT),
    )(gt_f, pd_t, tgt_pad, fg_pad)
    return out[:, 0, :n]                             # (bs, N)


# --------------------------------------------------------------------------
# ATSS assigner (small glue in plain JAX, hot paths via the Pallas kernels)
# --------------------------------------------------------------------------
class ATSSAssignerPallas:
    def __init__(self, topk=9, num_classes=80):
        self.topk = topk
        self.num_classes = num_classes
        self.bg_idx = num_classes

    def __call__(self, anc_bboxes, n_level_bboxes, gt_labels, gt_bboxes,
                 mask_gt, pd_bboxes):
        n_anchors = anc_bboxes.shape[0]
        bs, n_max_boxes = gt_bboxes.shape[:2]
        self.n_anchors = n_anchors
        self.bs = bs
        self.n_max_boxes = n_max_boxes

        if n_max_boxes == 0:
            return (jnp.full((bs, n_anchors), self.bg_idx, dtype=jnp.int32),
                    jnp.zeros((bs, n_anchors, 4), jnp.float32),
                    jnp.zeros((bs, n_anchors, self.num_classes), jnp.float32),
                    jnp.zeros((bs, n_anchors), bool),
                    jnp.zeros((bs, n_anchors), jnp.int32))

        # ---- tiling: pad N only to a lane multiple (128); pick a large tile
        # independently (grid uses cdiv, partial trailing tile is fine). ----
        n_pad = _round_up(n_anchors, 128)
        tn = min(2048, n_pad)
        # keep double-buffered (n_max x tn) f32 blocks comfortably inside VMEM
        while tn > 256 and n_max_boxes * tn * 16 > (24 << 20):
            tn //= 2

        gt_f = gt_bboxes.astype(jnp.float32)                        # (bs, n_max, 4)
        anc_t = jnp.transpose(anc_bboxes.astype(jnp.float32))       # (4, N)
        anc_pad = jnp.pad(anc_t, ((0, 0), (0, n_pad - n_anchors)))  # (4, N_pad)
        mask_gt_f = mask_gt.astype(jnp.float32)                     # (bs, n_max, 1)

        # Kernel 1: pairwise IoU + squared center distance
        overlaps, distances = pairwise_geometry(gt_f, anc_pad, tn)

        # Plain-JAX glue on small tensors
        is_in_candidate, candidate_idxs = self.select_topk_candidates(
            distances, n_level_bboxes, mask_gt, n_pad)
        overlaps_thr_per_gt = self.thres_calculator(
            is_in_candidate, candidate_idxs, overlaps)

        # Kernel 3: fused mask construction + multi-gt resolution
        tgt_pad, fg_pad = assign_and_resolve(
            is_in_candidate, gt_f, anc_pad, overlaps_thr_per_gt, mask_gt_f, tn)
        target_gt_idx = tgt_pad[:, 0, :n_anchors]                   # (bs, N) int32
        fg_mask = fg_pad[:, 0, :n_anchors]                          # (bs, N) f32

        target_labels, target_bboxes, target_scores = self.get_targets(
            gt_labels, gt_bboxes, target_gt_idx, fg_mask)

        if pd_bboxes is not None:
            # Kernel 2: per-anchor gather IoU (replaces the masked-max)
            ious = gather_pred_iou(gt_f, pd_bboxes, tgt_pad, fg_pad, tn)
            target_scores = target_scores * ious[..., None]

        return (target_labels, target_bboxes, target_scores,
                fg_mask.astype(bool), target_gt_idx)

    def select_topk_candidates(self, distances, n_level_bboxes, mask_gt, n_pad):
        bs, n_max = distances.shape[:2]
        mask_b = mask_gt.astype(bool)                               # (bs, n_max, 1)
        b_ix = jnp.arange(bs)[:, None, None]
        g_ix = jnp.arange(n_max)[None, :, None]
        # Scatter counts directly into the padded-N width so kernel 3 can
        # consume the mask without an extra pad/copy.  Levels occupy disjoint
        # index ranges, so a single global scatter equals torch's per-level
        # one_hot(...).sum + count>1 suppression.
        counts = jnp.zeros((bs, n_max, n_pad), jnp.int32)
        candidate_idxs = []
        start_idx = 0
        for per_level_boxes in n_level_bboxes:
            end_idx = start_idx + per_level_boxes
            selected_k = min(self.topk, per_level_boxes)
            per_level_distances = distances[..., start_idx:end_idx]
            _, per_level_topk_idxs = jax.lax.top_k(-per_level_distances, selected_k)
            candidate_idxs.append(per_level_topk_idxs + start_idx)
            masked_idxs = jnp.where(mask_b, per_level_topk_idxs, 0) + start_idx
            counts = counts.at[b_ix, g_ix, masked_idxs].add(1)
            start_idx = end_idx
        is_in_candidate = jnp.where(counts > 1, 0, counts).astype(jnp.int8)
        return is_in_candidate, jnp.concatenate(candidate_idxs, axis=-1)

    def thres_calculator(self, is_in_candidate, candidate_idxs, overlaps):
        # Gather only the (bs, n_max, k) candidate positions; masking with the
        # gathered is_in_candidate reproduces torch's gather from
        # _candidate_overlaps without materializing it at full (bs,n_max,N).
        g_ov = jnp.take_along_axis(overlaps, candidate_idxs, axis=-1)
        g_in = jnp.take_along_axis(is_in_candidate, candidate_idxs, axis=-1)
        candidate_overlaps = jnp.where(g_in > 0, g_ov, 0.0)
        mean = jnp.mean(candidate_overlaps, axis=-1, keepdims=True)
        std = jnp.std(candidate_overlaps, axis=-1, keepdims=True, ddof=1)  # torch unbiased
        return mean + std                                           # (bs, n_max, 1)

    def get_targets(self, gt_labels, gt_bboxes, target_gt_idx, fg_mask):
        bs = target_gt_idx.shape[0]
        batch_idx = jnp.arange(bs, dtype=target_gt_idx.dtype)[:, None]
        flat_idx = target_gt_idx + batch_idx * self.n_max_boxes     # (bs, N)
        target_labels = gt_labels.reshape(-1)[flat_idx]             # (bs, N)
        target_labels = jnp.where(fg_mask > 0, target_labels,
                                  jnp.full_like(target_labels, self.bg_idx))
        target_bboxes = gt_bboxes.reshape(-1, 4)[flat_idx]          # (bs, N, 4)
        target_scores = jax.nn.one_hot(target_labels, self.num_classes + 1,
                                       dtype=jnp.float32)[..., :self.num_classes]
        return target_labels, target_bboxes, target_scores


# --------------------------------------------------------------------------
# deterministic example
# --------------------------------------------------------------------------
def make_anchor_boxes(feat_sizes, strides, scale=1.25):
    boxes = []
    for (h, w), s in zip(feat_sizes, strides):
        ys = (jnp.arange(h, dtype=jnp.float32) + 0.5) * s
        xs = (jnp.arange(w, dtype=jnp.float32) + 0.5) * s
        yy, xx = jnp.meshgrid(ys, xs, indexing="ij")
        half = 0.5 * scale * s
        b = jnp.stack([xx - half, yy - half, xx + half, yy + half], axis=-1)
        boxes.append(b.reshape(-1, 4))
    return jnp.concatenate(boxes, axis=0)


if __name__ == "__main__":
    topk, num_classes = 9, 16
    bs, n_max_boxes = 2, 8
    feat_sizes = [(8, 8), (4, 4), (3, 3)]
    strides = [8, 16, 21]
    n_level_bboxes = [h * w for h, w in feat_sizes]      # [64, 16, 9] -> 89 anchors
    anc_bboxes = make_anchor_boxes(feat_sizes, strides)
    n_anchors = anc_bboxes.shape[0]

    key = jax.random.PRNGKey(0)
    k1, k2, k3, k4 = jax.random.split(key, 4)
    cxy = jax.random.uniform(k1, (bs, n_max_boxes, 2), minval=8.0, maxval=56.0)
    wh = jax.random.uniform(k2, (bs, n_max_boxes, 2), minval=8.0, maxval=28.0)
    gt_bboxes = jnp.concatenate([cxy - wh / 2, cxy + wh / 2], axis=-1)
    gt_labels = jax.random.randint(k3, (bs, n_max_boxes, 1), 0, num_classes).astype(jnp.int32)
    mask_gt = (jnp.arange(n_max_boxes)[None, :, None] <
               jnp.array([5, 7])[:, None, None]).astype(jnp.float32)
    pd_bboxes = anc_bboxes[None, :, :] + jax.random.uniform(
        k4, (bs, n_anchors, 4), minval=-3.0, maxval=3.0)

    assigner = ATSSAssignerPallas(topk=topk, num_classes=num_classes)
    outs = assigner(anc_bboxes, n_level_bboxes, gt_labels, gt_bboxes, mask_gt, pd_bboxes)
    outs = jax.block_until_ready(outs)
    target_labels, target_bboxes, target_scores, fg_mask, target_gt_idx = outs

    assert target_labels.shape == (bs, n_anchors)
    assert target_bboxes.shape == (bs, n_anchors, 4)
    assert target_scores.shape == (bs, n_anchors, num_classes)
    assert fg_mask.shape == (bs, n_anchors) and fg_mask.dtype == jnp.bool_
    assert target_gt_idx.shape == (bs, n_anchors)
    assert bool(jnp.all(jnp.isfinite(target_scores)))
    assert bool(jnp.all((target_gt_idx >= 0) & (target_gt_idx < n_max_boxes)))
    print("KERNEL_OK")
</pallas_src>

<mosaic_0001>
module attributes {stable_mosaic.version = 11 : i64} {
  func.func @_pairwise_geom_kernel(%arg0: i32, %arg1: i32, %arg2: memref<1x8x4xf32, #tpu.memory_space<vmem>>, %arg3: memref<4x128xf32, #tpu.memory_space<vmem>>, %arg4: memref<1x8x128xf32, #tpu.memory_space<vmem>>, %arg5: memref<1x8x128xf32, #tpu.memory_space<vmem>>) attributes {dimension_semantics = [#tpu.dimension_semantics<parallel>, #tpu.dimension_semantics<parallel>], iteration_bounds = array<i64: 2, 1>, scalar_prefetch = 0 : i64, scratch_operands = 0 : i64, tpu.core_type = #tpu.core_type<tc>, window_params = [{transform_indices = @transform_0, window_bounds = array<i64: 1, 8, 4>}, {transform_indices = @transform_1, window_bounds = array<i64: 4, 128>}, {transform_indices = @transform_2, window_bounds = array<i64: 1, 8, 128>}, {transform_indices = @transform_3, window_bounds = array<i64: 1, 8, 128>}]} {
    %c0 = arith.constant 0 : index
    %c0_0 = arith.constant 0 : index
    %c0_1 = arith.constant 0 : index
    %0 = vector.load %arg2[%c0, %c0_0, %c0_1] : memref<1x8x4xf32, #tpu.memory_space<vmem>>, vector<1x8x4xf32>
    %1 = vector.shape_cast %0 : vector<1x8x4xf32> to vector<8x4xf32>
    %c0_2 = arith.constant 0 : index
    %c0_3 = arith.constant 0 : index
    %2 = vector.load %arg3[%c0_2, %c0_3] : memref<4x128xf32, #tpu.memory_space<vmem>>, vector<4x128xf32>
    %3 = vector.extract_strided_slice %1 {offsets = [0, 0], sizes = [8, 1], strides = [1, 1]} : vector<8x4xf32> to vector<8x1xf32>
    %4 = vector.extract_strided_slice %1 {offsets = [0, 1], sizes = [8, 1], strides = [1, 1]} : vector<8x4xf32> to vector<8x1xf32>
    %5 = vector.extract_strided_slice %1 {offsets = [0, 2], sizes = [8, 1], strides = [1, 1]} : vector<8x4xf32> to vector<8x1xf32>
    %6 = vector.extract_strided_slice %1 {offsets = [0, 3], sizes = [8, 1], strides = [1, 1]} : vector<8x4xf32> to vector<8x1xf32>
    %7 = vector.extract_strided_slice %2 {offsets = [0, 0], sizes = [1, 128], strides = [1, 1]} : vector<4x128xf32> to vector<1x128xf32>
    %8 = vector.extract_strided_slice %2 {offsets = [1, 0], sizes = [1, 128], strides = [1, 1]} : vector<4x128xf32> to vector<1x128xf32>
    %9 = vector.extract_strided_slice %2 {offsets = [2, 0], sizes = [1, 128], strides = [1, 1]} : vector<4x128xf32> to vector<1x128xf32>
    %10 = vector.extract_strided_slice %2 {offsets = [3, 0], sizes = [1, 128], strides = [1, 1]} : vector<4x128xf32> to vector<1x128xf32>
    %11 = arith.subf %5, %3 : vector<8x1xf32>
    %12 = arith.subf %6, %4 : vector<8x1xf32>
    %13 = arith.mulf %11, %12 : vector<8x1xf32>
    %14 = arith.subf %9, %7 : vector<1x128xf32>
    %15 = arith.subf %10, %8 : vector<1x128xf32>
    %16 = arith.mulf %14, %15 : vector<1x128xf32>
    %17 = vector.broadcast %5 : vector<8x1xf32> to vector<8x128xf32>
    %18 = vector.broadcast %9 : vector<1x128xf32> to vector<8x128xf32>
    %19 = arith.minimumf %17, %18 : vector<8x128xf32>
    %20 = vector.broadcast %3 : vector<8x1xf32> to vector<8x128xf32>
    %21 = vector.broadcast %7 : vector<1x128xf32> to vector<8x128xf32>
    %22 = arith.maximumf %20, %21 : vector<8x128xf32>
    %23 = arith.subf %19, %22 : vector<8x128xf32>
    %cst = arith.constant 0.000000e+00 : f32
    %24 = vector.broadcast %cst : f32 to vector<8x128xf32>
    %25 = arith.maximumf %23, %24 : vector<8x128xf32>
    %26 = vector.broadcast %6 : vector<8x1xf32> to vector<8x128xf32>
    %27 = vector.broadcast %10 : vector<1x128xf32> to vector<8x128xf32>
    %28 = arith.minimumf %26, %27 : vector<8x128xf32>
    %29 = vector.broadcast %4 : vector<8x1xf32> to vector<8x128xf32>
    %30 = vector.broadcast %8 : vector<1x128xf32> to vector<8x128xf32>
    %31 = arith.maximumf %29, %30 : vector<8x128xf32>
    %32 = arith.subf %28, %31 : vector<8x128xf32>
    %cst_4 = arith.constant 0.000000e+00 : f32
    %33 = vector.broadcast %cst_4 : f32 to vector<8x128xf32>
    %34 = arith.maximumf %32, %33 : vector<8x128xf32>
    %35 = arith.mulf %25, %34 : vector<8x128xf32>
    %36 = vector.broadcast %13 : vector<8x1xf32> to vector<8x128xf32>
    %37 = vector.broadcast %16 : vector<1x128xf32> to vector<8x128xf32>
    %38 = arith.addf %36, %37 : vector<8x128xf32>
    %39 = arith.subf %38, %35 : vector<8x128xf32>
    %cst_5 = arith.constant 9.99999997E-7 : f32
    %40 = vector.broadcast %cst_5 : f32 to vector<8x128xf32>
    %41 = arith.maximumf %39, %40 : vector<8x128xf32>
    %42 = arith.divf %35, %41 : vector<8x128xf32>
    %c0_6 = arith.constant 0 : index
    %c0_7 = arith.constant 0 : index
    %c0_8 = arith.constant 0 : index
    %43 = vector.load %arg4[%c0_6, %c0_7, %c0_8] : memref<1x8x128xf32, #tpu.memory_space<vmem>>, vector<1x8x128xf32>
    %44 = vector.shape_cast %43 : vector<1x8x128xf32> to vector<8x128xf32>
    %45 = vector.shape_cast %42 : vector<8x128xf32> to vector<1x8x128xf32>
    tpu.vector_store %arg4[%c0_6, %c0_7, %c0_8], %45 {strides = array<i32>} : memref<1x8x128xf32, #tpu.memory_space<vmem>>, vector<1x8x128xf32>,
    %46 = arith.addf %3, %5 : vector<8x1xf32>
    %cst_9 = arith.constant 5.000000e-01 : f32
    %47 = vector.broadcast %cst_9 : f32 to vector<8x1xf32>
    %48 = arith.mulf %46, %47 : vector<8x1xf32>
    %49 = arith.addf %7, %9 : vector<1x128xf32>
    %cst_10 = arith.constant 5.000000e-01 : f32
    %50 = vector.broadcast %cst_10 : f32 to vector<1x128xf32>
    %51 = arith.mulf %49, %50 : vector<1x128xf32>
    %52 = vector.broadcast %48 : vector<8x1xf32> to vector<8x128xf32>
    %53 = vector.broadcast %51 : vector<1x128xf32> to vector<8x128xf32>
    %54 = arith.subf %52, %53 : vector<8x128xf32>
    %55 = arith.addf %4, %6 : vector<8x1xf32>
    %cst_11 = arith.constant 5.000000e-01 : f32
    %56 = vector.broadcast %cst_11 : f32 to vector<8x1xf32>
    %57 = arith.mulf %55, %56 : vector<8x1xf32>
    %58 = arith.addf %8, %10 : vector<1x128xf32>
    %cst_12 = arith.constant 5.000000e-01 : f32
    %59 = vector.broadcast %cst_12 : f32 to vector<1x128xf32>
    %60 = arith.mulf %58, %59 : vector<1x128xf32>
    %61 = vector.broadcast %57 : vector<8x1xf32> to vector<8x128xf32>
    %62 = vector.broadcast %60 : vector<1x128xf32> to vector<8x128xf32>
    %63 = arith.subf %61, %62 : vector<8x128xf32>
    %64 = arith.mulf %54, %54 : vector<8x128xf32>
    %65 = arith.mulf %63, %63 : vector<8x128xf32>
    %66 = arith.addf %64, %65 : vector<8x128xf32>
    %c0_13 = arith.constant 0 : index
    %c0_14 = arith.constant 0 : index
    %c0_15 = arith.constant 0 : index
    %67 = vector.load %arg5[%c0_13, %c0_14, %c0_15] : memref<1x8x128xf32, #tpu.memory_space<vmem>>, vector<1x8x128xf32>
    %68 = vector.shape_cast %67 : vector<1x8x128xf32> to vector<8x128xf32>
    %69 = vector.shape_cast %66 : vector<8x128xf32> to vector<1x8x128xf32>
    tpu.vector_store %arg5[%c0_13, %c0_14, %c0_15], %69 {strides = array<i32>} : memref<1x8x128xf32, #tpu.memory_space<vmem>>, vector<1x8x128xf32>,
    return
  }
  func.func @transform_0(%arg0: i32, %arg1: i32) -> (i32, i32, i32) {
    %c0_i32 = arith.constant 0 : i32
    %c0_i32_0 = arith.constant 0 : i32
    %c0_i32_1 = arith.constant 0 : i32
    return %arg0, %c0_i32, %c0_i32_0 : i32, i32, i32
  }
  func.func @transform_1(%arg0: i32, %arg1: i32) -> (i32, i32) {
    %c0_i32 = arith.constant 0 : i32
    %c0_i32_0 = arith.constant 0 : i32
    return %c0_i32, %arg1 : i32, i32
  }
  func.func @transform_2(%arg0: i32, %arg1: i32) -> (i32, i32, i32) {
    %c0_i32 = arith.constant 0 : i32
    %c0_i32_0 = arith.constant 0 : i32
    return %arg0, %c0_i32, %arg1 : i32, i32, i32
  }
  func.func @transform_3(%arg0: i32, %arg1: i32) -> (i32, i32, i32) {
    %c0_i32 = arith.constant 0 : i32
    %c0_i32_0 = arith.constant 0 : i32
    return %arg0, %c0_i32, %arg1 : i32, i32, i32
  }
}

</mosaic_0001>

<llo_original>
// kernel: tpu_custom_call.1
$region0: #{tpu_custom_call.1}
  #allocation0 [shape = 'u32[]', space=smem, size = 0x4, offset = 0x4, fixed_abs, tag = 'smem constant byte address 0x4 - core index']
  #allocation1 [shape = 'u32[144,128]{1,0:T(1,128)}', space=vmem, size = 0x12000, scoped, tag = 'internal scratch']
  %s0 = inlined_call_operand.vmem [shape: f32[2,8,4], index: 0, kind: input, shape index: {}]
  %s1 = inlined_call_operand.vmem [shape: f32[4,128], index: 1, kind: input, shape index: {}]
  %s2 = inlined_call_operand.hbm [shape: f32[2,8,128], index: 2, kind: output, shape index: {0}]
  %s3 = inlined_call_operand.hbm [shape: f32[2,8,128], index: 3, kind: output, shape index: {1}]
  %4 = xla_tuple %s2, %s3
  %s5 = sld [smem:[#allocation0]]
  $region49: #{tpu_custom_call.1} parent=0
    _
  %s7 = ssub.s32 1, %s5
  %s8 = scalar_select 0, %s7, %s5
  $region1: #{tpu_custom_call.1} parent=0
    #allocation2 [shape = 'u8[8192]{0}', space=vmem, size = 0x2000, scoped, tag = 'output window, operand 0']
    #allocation3 [shape = 's32[2]{0}', space=sflag, size = 0x8, scoped, tag = 'scoped memory for tpu_custom_call.1']
    #allocation4 [shape = 'u8[8192]{0}', space=vmem, size = 0x2000, scoped, tag = 'output window, operand 1']
    #allocation5 [shape = 's32[2]{0}', space=sflag, size = 0x8, scoped, tag = 'scoped memory for tpu_custom_call.1']
    %9 = vsyncpa [#allocation3], 0
    %s10 = scalar_lea.sflag [#allocation3], 1
    %11 = vsyncpa %s10, 0
    %12 = vsyncpa [#allocation5], 0
    %s13 = scalar_lea.sflag [#allocation5], 1
    %14 = vsyncpa %s13, 0
    loop: start=0, step=1, limit=4
    $region2: #{tpu_custom_call.1} parent=1 // loop_pre_header
      _
    $region3: #{tpu_custom_call.1} parent=1 // loop_header
      %s16 = sphi 0, %s20
      %p17 = scmp.ge.s32.totalorder %s16, 4
      %s23 = sphi 0, %s35
      %s24 = sphi 0, %s31
      %s25 = sphi 0, %s23
      %s26 = sphi 0, %s24
      %s27 = sphi 0, %s25
      %s28 = sphi 0, %s26
      %s38 = sphi 0, %s40
      %s41 = sphi 0, %s38
      %s42 = sphi 0, %s41
      %s58 = sphi 0, %s42
      %s64 = sphi 0, %s66
      %s67 = sphi 0, %s64
      %s68 = sphi 0, %s67
      %s84 = sphi 0, %s68
      %s92 = sphi 0, %s94
      %s95 = sphi 0, %s92
      %s96 = sphi 0, %s95
      %s112 = sphi 0, %s96
      %s120 = sphi 0, %s122
      %s123 = sphi 0, %s120
      %s124 = sphi 0, %s123
      %s140 = sphi 0, %s124
    $region4: #{tpu_custom_call.1} parent=1 // loop_header_branch
      %19 = sbr.rel (%p17) target = $region8
    $region5: #{tpu_custom_call.1} parent=1 // loop_body
      %s21 = ssub.s32 %s16, 1
      %s22 = ssub.s32 %s16, 2
      %s29 = sadd.s32 1, %s24
      %p30 = scmp.ge.s32.totalorder %s29, 1
      %s31 = scalar_select %p30, 0, %s29
      %s32 = sadd.s32 1, %s23
      %s33 = scalar_select %p30, %s32, %s23
      %p34 = scmp.ge.s32.totalorder %s33, 2
      %s35 = scalar_select %p34, 0, %s33
      %s36 = ssub.s32 %s23, %s35
      %p37 = scmp.eq.s32.totalorder %s36, 0
      %s39 = sadd.s32 %s38, 1
      %s40 = scalar_select %p37, %s38, %s39
      %p43 = pneg %p37
      %p44 = scmp.eq.s32.totalorder %s16, 1
      %p45 = por %p43, %p44
      %p46 = scmp.ne.s32.totalorder %s38, %s41
      %p47 = scmp.eq.s32.totalorder %s16, 0
      %p48 = por %p46, %p47
      %p49 = scmp.ne.s32.totalorder %s38, %s41
      %p50 = scmp.eq.s32.totalorder %s21, 1
      %p51 = por %p49, %p50
      %p52 = scmp.ne.s32.totalorder %s41, %s42
      %p53 = scmp.eq.s32.totalorder %s21, 0
      %p54 = por %p52, %p53
      %p55 = scmp.ne.s32.totalorder %s41, %s42
      %p56 = scmp.eq.s32.totalorder %s22, 1
      %p57 = por %p55, %p56
      %p59 = scmp.ne.s32.totalorder %s42, %s58
      %p60 = scmp.eq.s32.totalorder %s22, 0
      %p61 = por %p59, %p60
      %s62 = ssub.s32 %s24, %s31
      %p63 = scmp.eq.s32.totalorder %s62, 0
      %s65 = sadd.s32 %s64, 1
      %s66 = scalar_select %p63, %s64, %s65
      %p69 = pneg %p63
      %p70 = scmp.eq.s32.totalorder %s16, 1
      %p71 = por %p69, %p70
      %p72 = scmp.ne.s32.totalorder %s64, %s67
      %p73 = scmp.eq.s32.totalorder %s16, 0
      %p74 = por %p72, %p73
      %p75 = scmp.ne.s32.totalorder %s64, %s67
      %p76 = scmp.eq.s32.totalorder %s21, 1
      %p77 = por %p75, %p76
      %p78 = scmp.ne.s32.totalorder %s67, %s68
      %p79 = scmp.eq.s32.totalorder %s21, 0
      %p80 = por %p78, %p79
      %p81 = scmp.ne.s32.totalorder %s67, %s68
      %p82 = scmp.eq.s32.totalorder %s22, 1
      %p83 = por %p81, %p82
      %p85 = scmp.ne.s32.totalorder %s68, %s84
      %p86 = scmp.eq.s32.totalorder %s22, 0
      %p87 = por %p85, %p86
      %s88 = ssub.s32 %s23, %s35
      %s89 = ssub.s32 %s24, %s31
      %s90 = sor.u32 %s88, %s89
      %p91 = scmp.eq.s32.totalorder %s90, 0
      %s93 = sadd.s32 %s92, 1
      %s94 = scalar_select %p91, %s92, %s93
      %p97 = pneg %p91
      %p98 = scmp.eq.s32.totalorder %s16, 1
      %p99 = por %p97, %p98
      %p100 = scmp.ne.s32.totalorder %s92, %s95
      %p101 = scmp.eq.s32.totalorder %s16, 0
      %p102 = por %p100, %p101
      %p103 = scmp.ne.s32.totalorder %s92, %s95
      %p104 = scmp.eq.s32.totalorder %s21, 1
      %p105 = por %p103, %p104
      %p106 = scmp.ne.s32.totalorder %s95, %s96
      %p107 = scmp.eq.s32.totalorder %s21, 0
      %p108 = por %p106, %p107
      %p109 = scmp.ne.s32.totalorder %s95, %s96
      %p110 = scmp.eq.s32.totalorder %s22, 1
      %p111 = por %p109, %p110
      %p113 = scmp.ne.s32.totalorder %s96, %s112
      %p114 = scmp.eq.s32.totalorder %s22, 0
      %p115 = por %p113, %p114
      %s116 = ssub.s32 %s23, %s35
      %s117 = ssub.s32 %s24, %s31
      %s118 = sor.u32 %s116, %s117
      %p119 = scmp.eq.s32.totalorder %s118, 0
      %s121 = sadd.s32 %s120, 1
      %s122 = scalar_select %p119, %s120, %s121
      %p125 = pneg %p119
      %p126 = scmp.eq.s32.totalorder %s16, 1
      %p127 = por %p125, %p126
      %p128 = scmp.ne.s32.totalorder %s120, %s123
      %p129 = scmp.eq.s32.totalorder %s16, 0
      %p130 = por %p128, %p129
      %p131 = scmp.ne.s32.totalorder %s120, %s123
      %p132 = scmp.eq.s32.totalorder %s21, 1
      %p133 = por %p131, %p132
      %p134 = scmp.ne.s32.totalorder %s123, %s124
      %p135 = scmp.eq.s32.totalorder %s21, 0
      %p136 = por %p134, %p135
      %p137 = scmp.ne.s32.totalorder %s123, %s124
      %p138 = scmp.eq.s32.totalorder %s22, 1
      %p139 = por %p137, %p138
      %p141 = scmp.ne.s32.totalorder %s124, %s140
      %p142 = scmp.eq.s32.totalorder %s22, 0
      %p143 = por %p141, %p142
      %p144 = scmp.le.s32.totalorder 1, %s16
      %p145 = scmp.lt.s32.totalorder %s16, 3
      %p146 = pnand %p144, %p145
      %p147 = pneg %p146
      // Predicated region
      $region9: #{tpu_custom_call.1} parent=5 // pred_check
        _
      $region10: #{tpu_custom_call.1} parent=5 // pred_check_branch
        %149 = sbr.rel (%p146) target = $region12
      $region11: #{tpu_custom_call.1} parent=5 // pred_region
        %s150 = ssub.s32 %s16, 1
        // Predicated region
        $region13: #{tpu_custom_call.1} parent=11 // pred_check
          %p151 = pneg %p80
        $region14: #{tpu_custom_call.1} parent=11 // pred_check_branch
          %153 = sbr.rel (%p151) target = $region16
        $region15: #{tpu_custom_call.1} parent=11 // pred_region
          %p154 = scmp.lt.s32.totalorder %s26, 0
          %s155 = scalar_select %p154, %s26, 0
          %s156 = smul.addr %s155, 4
          %s157 = scalar_lea.vmem %s1, %s156
        $region16: #{tpu_custom_call.1} parent=11 // pred_fallthru
          _
      $region12: #{tpu_custom_call.1} parent=5 // pred_fallthru
        _
      %p158 = scmp.lt.s32.totalorder %s16, 2
      // Predicated region
      $region17: #{tpu_custom_call.1} parent=5 // pred_check
        %p159 = pneg %p158
      $region18: #{tpu_custom_call.1} parent=5 // pred_check_branch
        %161 = sbr.rel (%p159) target = $region20
      $region19: #{tpu_custom_call.1} parent=5 // pred_region
        // Predicated region
        $region21: #{tpu_custom_call.1} parent=19 // pred_check
          %p162 = pneg %p48
        $region22: #{tpu_custom_call.1} parent=19 // pred_check_branch
          %164 = sbr.rel (%p162) target = $region24
        $region23: #{tpu_custom_call.1} parent=19 // pred_region
          %p165 = scmp.lt.s32.totalorder %s23, 1
          %s166 = scalar_select %p165, %s23, 1
          %s167 = smul.addr %s166, 8
          %s168 = scalar_lea.vmem %s0, %s167
        $region24: #{tpu_custom_call.1} parent=19 // pred_fallthru
          _
      $region20: #{tpu_custom_call.1} parent=5 // pred_fallthru
        _
      %p169 = scmp.le.s32.totalorder 1, %s16
      %p170 = scmp.lt.s32.totalorder %s16, 3
      %p171 = pnand %p169, %p170
      %p172 = pneg %p171
      // Predicated region
      $region25: #{tpu_custom_call.1} parent=5 // pred_check
        _
      $region26: #{tpu_custom_call.1} parent=5 // pred_check_branch
        %174 = sbr.rel (%p171) target = $region28
      $region27: #{tpu_custom_call.1} parent=5 // pred_region
        %s175 = ssub.s32 %s16, 1
        %p176 = scmp.lt.s32.totalorder %s25, 1
        %s177 = scalar_select %p176, %s25, 1
        %s178 = smul.addr %s177, 8
        %s179 = scalar_lea.vmem %s0, %s178
        %p180 = pneg %p54
        %p181 = pneg %p51
        %p182 = scmp.lt.s32.totalorder %s26, 0
        %s183 = scalar_select %p182, %s26, 0
        %s184 = smul.addr %s183, 4
        %s185 = scalar_lea.vmem %s1, %s184
        %p186 = pneg %p80
        %p187 = pneg %p77
        %p188 = pneg %p108
        %p189 = pneg %p105
        %s190 = sand.u32 %s95, 1
        %s191 = scalar_lea.sflag [#allocation3], %s190
        %s192 = sand.u32 %s95, 1
        %s193 = smul.addr %s192, 8
        %s194 = scalar_lea.vmem [#allocation2], %s193
        %p195 = pneg %p136
        %p196 = pneg %p133
        %s197 = sand.u32 %s123, 1
        %s198 = scalar_lea.sflag [#allocation5], %s197
        %s199 = sand.u32 %s123, 1
        %s200 = smul.addr %s199, 8
        %s201 = scalar_lea.vmem [#allocation4], %s200
        %p202 = scmp.lt.s32.totalorder %s25, 1
        %s203 = scalar_select %p202, %s25, 1
        %s204 = smul.addr %s203, 8
        %s205 = scalar_lea.vmem %s0, %s204
        %p206 = scmp.lt.s32.totalorder %s26, 0
        %s207 = scalar_select %p206, %s26, 0
        %s208 = smul.addr %s207, 4
        %s209 = scalar_lea.vmem %s1, %s208
        %v210 = vld [vmem:[%s205] sm:$0xff]
        %v211 = vld [vmem:[%s209] sm:$0xf]
        %213 = vrot.lane.b32.xlu0 %v210, 2
        %v214 = vpop.permute.xlu0 %213
        %v216 = vsub.f32 %v210, %v214
        %218 = vrot.lane.b32.xlu0 %v216, 127
        %v219 = vpop.permute.xlu0 %218
        %v221 = vmul.f32 %v216, %v219
        %v223 = vrot.slane %v211, 6
        %v225 = vsub.f32 %v211, %v223
        %v227 = vrot.slane %v225, 1
        %v229 = vmul.f32 %v225, %v227
        %230 = vset.pattern.permute.xlu0 2
        %231 = vperm.xlu0 %230, %v210
        %v232 = vpop.permute.xlu0 %231
        %v234 = vlaneseq
        %v235 = vshrl.u32 %v234, 7
        %v236 = vsub.s32 2, %v235
        %v237 = vrot.slane %v211, %v236
        %v238 = vmin.f32 %v232, %v237
        %239 = vset.pattern.permute.xlu0 0
        %240 = vperm.xlu0 %239, %v210
        %v241 = vpop.permute.xlu0 %240
        %v243 = vlaneseq
        %v244 = vshrl.u32 %v243, 7
        %v245 = vsub.s32 0, %v244
        %v246 = vrot.slane %v211, %v245
        %v247 = vmax.f32 %v241, %v246
        %v248 = vsub.f32 %v238, %v247
        %v249 = vmax.f32 %v248, 0.0
        %250 = vset.pattern.permute.xlu0 3
        %251 = vperm.xlu0 %250, %v210
        %v252 = vpop.permute.xlu0 %251
        %v254 = vlaneseq
        %v255 = vshrl.u32 %v254, 7
        %v256 = vsub.s32 3, %v255
        %v257 = vrot.slane %v211, %v256
        %v258 = vmin.f32 %v252, %v257
        %259 = vset.pattern.permute.xlu0 1
        %260 = vperm.xlu0 %259, %v210
        %v261 = vpop.permute.xlu0 %260
        %v263 = vlaneseq
        %v264 = vshrl.u32 %v263, 7
        %v265 = vsub.s32 1, %v264
        %v266 = vrot.slane %v211, %v265
        %v267 = vmax.f32 %v261, %v266
        %v268 = vsub.f32 %v258, %v267
        %v269 = vmax.f32 %v268, 0.0
        %v270 = vmul.f32 %v249, %v269
        %272 = vset.pattern.permute.xlu0 2
        %273 = vperm.xlu0 %272, %v221
        %v274 = vpop.permute.xlu0 %273
        %v276 = vlaneseq
        %v277 = vshrl.u32 %v276, 7
        %v278 = vsub.s32 2, %v277
        %v279 = vrot.slane %v229, %v278
        %v280 = vadd.f32 %v274, %v279
        %v281 = vsub.f32 %v280, %v270
        %v282 = vmax.f32 %v281, 1e-06
        %v283 = vrcp.pop %v282
        %v284 = vmul.f32 %v270, %v283
        %285 = vst [vmem:[%s194] sm:$0xff] %v284
        %286 = vrot.lane.b32.xlu0 %v210, 126
        %v287 = vpop.permute.xlu0 %286
        %v289 = vadd.f32 %v210, %v287
        %v290 = vmul.f32 %v289, 0.5
        %v291 = vrot.slane %v211, 2
        %v293 = vadd.f32 %v211, %v291
        %v294 = vmul.f32 %v293, 0.5
        %296 = vset.pattern.permute.xlu0 0
        %297 = vperm.xlu0 %296, %v290
        %v298 = vpop.permute.xlu0 %297
        %v300 = vlaneseq
        %v301 = vshrl.u32 %v300, 7
        %v302 = vsub.s32 0, %v301
        %v303 = vrot.slane %v294, %v302
        %v304 = vsub.f32 %v298, %v303
        %305 = vset.pattern.permute.xlu0 1
        %306 = vperm.xlu0 %305, %v290
        %v307 = vpop.permute.xlu0 %306
        %v309 = vlaneseq
        %v310 = vshrl.u32 %v309, 7
        %v311 = vsub.s32 1, %v310
        %v312 = vrot.slane %v294, %v311
        %v313 = vsub.f32 %v307, %v312
        %v314 = vmul.f32 %v304, %v304
        %v315 = vmul.f32 %v313, %v313
        %v316 = vadd.f32 %v314, %v315
        %317 = vst [vmem:[%s201] sm:$0xff] %v316
        %s318 = sand.u32 %s95, 1
        %s319 = scalar_lea.sflag [#allocation3], %s318
        %s320 = sand.u32 %s95, 1
        %s321 = smul.addr %s320, 8
        %s322 = scalar_lea.vmem [#allocation2], %s321
        %s323 = sand.u32 %s123, 1
        %s324 = scalar_lea.sflag [#allocation5], %s323
        %s325 = sand.u32 %s123, 1
        %s326 = smul.addr %s325, 8
        %s327 = scalar_lea.vmem [#allocation4], %s326
        // Predicated region
        $region29: #{tpu_custom_call.1} parent=27 // pred_check
          %p328 = pneg %p105
        $region30: #{tpu_custom_call.1} parent=27 // pred_check_branch
          %330 = sbr.rel (%p328) target = $region32
        $region31: #{tpu_custom_call.1} parent=27 // pred_region
          %s332 = ssub.s32 128, 128
          %333 = vsyncadd %s319, %s332
          %s334 = sadd.s32 %s26, %s25
          %s335 = smul.addr %s334, 128
          %s336 = scalar_lea.hbm %s2, %s335
          %s338 = sshll.u32 %s322, 4
          %s339 = int_to_ptr.vmem [resolvable:$true] %s338
          %341 = dma.vmem_to_hbm [thread:$0]  %s339, 128, %s336, %s319
        $region32: #{tpu_custom_call.1} parent=27 // pred_fallthru
          _
        // Predicated region
        $region33: #{tpu_custom_call.1} parent=27 // pred_check
          %p342 = pneg %p133
        $region34: #{tpu_custom_call.1} parent=27 // pred_check_branch
          %344 = sbr.rel (%p342) target = $region36
        $region35: #{tpu_custom_call.1} parent=27 // pred_region
          %s346 = ssub.s32 128, 128
          %347 = vsyncadd %s324, %s346
          %s348 = sadd.s32 %s26, %s25
          %s349 = smul.addr %s348, 128
          %s350 = scalar_lea.hbm %s3, %s349
          %s352 = sshll.u32 %s327, 4
          %s353 = int_to_ptr.vmem [resolvable:$true] %s352
          %355 = dma.vmem_to_hbm [thread:$0]  %s353, 128, %s350, %s324
        $region36: #{tpu_custom_call.1} parent=27 // pred_fallthru
          _
      $region28: #{tpu_custom_call.1} parent=5 // pred_fallthru
        _
      %p356 = scmp.le.s32.totalorder 2, %s16
      // Predicated region
      $region37: #{tpu_custom_call.1} parent=5 // pred_check
        %p357 = pneg %p356
      $region38: #{tpu_custom_call.1} parent=5 // pred_check_branch
        %359 = sbr.rel (%p357) target = $region40
      $region39: #{tpu_custom_call.1} parent=5 // pred_region
        %s360 = ssub.s32 %s16, 2
        // Predicated region
        $region41: #{tpu_custom_call.1} parent=39 // pred_check
          %p361 = pneg %p111
        $region42: #{tpu_custom_call.1} parent=39 // pred_check_branch
          %363 = sbr.rel (%p361) target = $region44
        $region43: #{tpu_custom_call.1} parent=39 // pred_region
          %s364 = sand.u32 %s96, 1
          %s365 = scalar_lea.sflag [#allocation3], %s364
          %s366 = sand.u32 %s96, 1
          %s367 = smul.addr %s366, 8
          %s368 = scalar_lea.vmem [#allocation2], %s367
          %369 = dma.done %s365, 128
        $region44: #{tpu_custom_call.1} parent=39 // pred_fallthru
          _
        // Predicated region
        $region45: #{tpu_custom_call.1} parent=39 // pred_check
          %p370 = pneg %p139
        $region46: #{tpu_custom_call.1} parent=39 // pred_check_branch
          %372 = sbr.rel (%p370) target = $region48
        $region47: #{tpu_custom_call.1} parent=39 // pred_region
          %s373 = sand.u32 %s124, 1
          %s374 = scalar_lea.sflag [#allocation5], %s373
          %s375 = sand.u32 %s124, 1
          %s376 = smul.addr %s375, 8
          %s377 = scalar_lea.vmem [#allocation4], %s376
          %378 = dma.done %s374, 128
        $region48: #{tpu_custom_call.1} parent=39 // pred_fallthru
          _
      $region40: #{tpu_custom_call.1} parent=5 // pred_fallthru
        _
    $region6: #{tpu_custom_call.1} parent=1 // loop_footer
      %s20 = sadd.s32 1, %s16
    $region7: #{tpu_custom_call.1} parent=1 // loop_footer_branch
      %15 = sbr.rel target = $region3
    $region8: #{tpu_custom_call.1} parent=1 // loop_exit
      _
    %379 = vsyncpa [#allocation3], 1
    %s380 = scalar_lea.sflag [#allocation3], 1
    %381 = vsyncpa %s380, 1
    %382 = vsyncpa [#allocation5], 1
    %s383 = scalar_lea.sflag [#allocation5], 1
    %384 = vsyncpa %s383, 1

</llo_original>
